<compile_context>
chip_gen: v7x
topology: tpu7x:2x2x1
jax: 0.10.0
libtpu: 0.0.40
codegen_flags: <defaults>
</compile_context>

<pallas_src>
import functools

import jax
import jax.numpy as jnp
from jax import lax
from jax.experimental import pallas as pl
from jax.experimental.pallas import tpu as pltpu

LEAKY_SLOPE = 0.01   # nn.LeakyReLU() default negative_slope
BN_EPS = 1e-5        # nn.BatchNorm1d default eps
LANES = 128          # TPU vreg lane width
HALO = 8             # scratch halo (sublanes per side); multiple of 8 => aligned stores


# --------------------------------- kernel ---------------------------------- #
def basic_block_kernel(x_ref, w1_ref, g1_ref, be1_ref,
                       w2_ref, g2_ref, be2_ref, o_ref, xscr):
    """Fused BasicBlock forward.

    x_ref     : (N, L, Cp)        f32          activation, channels zero-padded to Cp
    w{1,2}_ref: (K*Cp, Cp)        matmul_dtype im2col-reshaped conv weights (zero-padded)
    g/be refs : (1, 1, Cp)        f32          BN gamma / beta (zero-padded channels)
    o_ref     : (N, L, Cp)        f32
    xscr      : (N, L+2*HALO, Cp) matmul_dtype reused halo'd staging scratch
    """
    N, L, Cp = x_ref.shape
    K = w1_ref.shape[0] // Cp
    pad = K // 2
    H = (xscr.shape[1] - L) // 2
    dt = xscr.dtype                    # MXU operand dtype (bf16 by default)

    # Zero the halo bands once (shared by both convs).  With H == 8 and L % 8 == 0
    # these are full (8,128)-tile, unmasked stores.
    halo_zeros = jnp.zeros((N, H, Cp), dt)
    xscr[:, 0:H, :] = halo_zeros
    xscr[:, H + L:H + L + H, :] = halo_zeros

    def conv(w_ref):
        # im2col from the halo'd scratch: K sublane-shifted views concatenated along
        # the (128-aligned) lane axis -> one MXU matmul, reduction dim K*Cp.
        # NOTE: when C is far below 128 (or not a multiple of it), padding the
        # reduction dim as a whole (K*C -> next multiple of 128) instead of per-tap
        # would cut MXU work, at the cost of lane-misaligned concats — benchmark.
        vpad = xscr[...]                                   # (N, L+2H, Cp) in dt
        base = H - pad
        if K > 1:
            cols = jnp.concatenate(
                [vpad[:, base + k:base + k + L, :] for k in range(K)], axis=2)
        else:
            cols = vpad[:, base:base + L, :]
        cols = cols.reshape(N * L, K * Cp)
        out = jnp.dot(cols, w_ref[...], preferred_element_type=jnp.float32)
        return out.reshape(N, L, Cp)

    def bn(v, g_ref, be_ref):
        # Training-mode batch statistics (biased var), two-pass (centered) to avoid
        # E[x^2]-E[x]^2 cancellation; folded into a single per-element FMA.
        # (Conv biases were dropped in the wrapper: a per-channel constant cancels
        # exactly through the mean subtraction here.)
        cnt = jnp.float32(N * L)
        mean = jnp.sum(v, axis=(0, 1), keepdims=True) / cnt        # (1, 1, Cp)
        cen = v - mean
        var = jnp.sum(cen * cen, axis=(0, 1), keepdims=True) / cnt
        scale = g_ref[...] * lax.rsqrt(var + BN_EPS)
        shift = be_ref[...] - mean * scale
        return v * scale + shift

    def lrelu(v):                      # 2 VALU ops (slope in [0, 1])
        return jnp.maximum(v, LEAKY_SLOPE * v)

    # conv1 -> bn1 -> leaky_relu  (activation staged once, already in matmul_dtype)
    xscr[:, H:H + L, :] = x_ref[...].astype(dt)            # aligned interior store
    out1 = lrelu(bn(conv(w1_ref), g1_ref, be1_ref))

    # conv2 -> bn2  (reuse the same scratch; halos are still zero)
    xscr[:, H:H + L, :] = out1.astype(dt)
    out2 = bn(conv(w2_ref), g2_ref, be2_ref)

    # residual (identity: stride=1, downsample=None) is the unpadded f32 input.
    o_ref[...] = lrelu(out2 + x_ref[...]).astype(o_ref.dtype)


# -------------------------------- wrappers ---------------------------------- #
def basic_block_nlc(x_nlc, params, *, matmul_dtype=jnp.bfloat16):
    """Core entry point: x_nlc is (N, L, Cp) f32 with channels zero-padded to a
    multiple of 128.  Returns (N, L, Cp) f32.  Use this form between stacked
    BasicBlocks so no transpose/pad HBM round trips are paid per block."""
    w1, b1, g1, be1, w2, b2, g2, be2 = params
    del b1, b2   # conv biases cancel exactly through batch-stat BN mean subtraction
    N, L, Cp = x_nlc.shape
    C, _, K = w1.shape
    pad = K // 2
    assert K % 2 == 1, "even kernel_size changes the PyTorch Conv1d output length"
    assert Cp % LANES == 0 and pad <= HALO

    def prep_w(w):   # (Cout, Cin, K) -> (K*Cp, Cp) im2col weight, zero-padded
        wt = jnp.transpose(w, (2, 1, 0))                              # (K, Cin, Cout)
        wt = jnp.pad(wt, ((0, 0), (0, Cp - C), (0, Cp - C)))
        return wt.reshape(K * Cp, Cp).astype(matmul_dtype)

    def prep_c(v):   # (C,) -> (1, 1, Cp), zero-padded, f32
        return jnp.pad(v, (0, Cp - C)).reshape(1, 1, Cp).astype(jnp.float32)

    # VMEM budget: resident set (input + output + f32 temporaries + matmul_dtype
    # scratch/im2col/weights) with 2x headroom, capped at ~80% of this chip's VMEM.
    esize = jnp.dtype(matmul_dtype).itemsize
    est = (4 * N * L * Cp * 5                          # x, out1/out2, centered, output (f32)
           + esize * (N * (L + 2 * HALO) * Cp          # staging scratch
                      + N * L * K * Cp                 # im2col cols
                      + 2 * K * Cp * Cp)               # both weights
           + 4 * 4 * Cp)                               # bn params
    try:
        cap = int(pltpu.get_tpu_info().vmem_capacity_bytes)
    except Exception:                                  # conservative fallback (v7x)
        cap = 64 * 2**20
    budget = int(0.8 * cap)
    need = 2 * est
    if need > budget:
        # TODO(synk): L-tiled two-pass-BN variant for blocks that exceed VMEM (v7x).
        raise ValueError(
            f"BasicBlock working set ~{need >> 20} MiB exceeds VMEM budget "
            f"{budget >> 20} MiB; needs the tiled variant")
    vmem_limit = max(4 * 2**20, min(need, budget))

    vmem = functools.partial(pl.BlockSpec, memory_space=pltpu.MemorySpace.VMEM)
    return pl.pallas_call(
        basic_block_kernel,
        out_shape=jax.ShapeDtypeStruct((N, L, Cp), jnp.float32),
        in_specs=[vmem()] * 7,
        out_specs=vmem(),
        scratch_shapes=[pltpu.VMEM((N, L + 2 * HALO, Cp), matmul_dtype)],
        compiler_params=pltpu.CompilerParams(vmem_limit_bytes=vmem_limit),
    )(x_nlc, prep_w(w1), prep_c(g1), prep_c(be1), prep_w(w2), prep_c(g2), prep_c(be2))


def basic_block(x, params, *, matmul_dtype=jnp.bfloat16):
    """Convenience wrapper taking PyTorch (N, C, L) layout and returning (N, C, L).
    For stacks of blocks, prefer basic_block_nlc to avoid per-block layout plumbing."""
    N, C, L = x.shape
    Cp = ((C + LANES - 1) // LANES) * LANES
    x_nlc = jnp.pad(jnp.transpose(x, (0, 2, 1)).astype(jnp.float32),
                    ((0, 0), (0, 0), (0, Cp - C)))
    out = basic_block_nlc(x_nlc, params, matmul_dtype=matmul_dtype)
    return jnp.transpose(out[:, :, :C], (0, 2, 1))


# --------------------------- pure-JAX reference ----------------------------- #
def basic_block_ref(x, params, *, matmul_dtype=jnp.float32):
    w1, b1, g1, be1, w2, b2, g2, be2 = params
    pad = w1.shape[-1] // 2

    def conv(y, w, b):
        out = lax.conv_general_dilated(
            y.astype(matmul_dtype), w.astype(matmul_dtype),
            window_strides=(1,), padding=[(pad, pad)],
            dimension_numbers=("NCH", "OIH", "NCH"),
            preferred_element_type=jnp.float32)
        return out + b[None, :, None]

    def bn(y, g, be):
        mean = y.mean(axis=(0, 2), keepdims=True)
        var = ((y - mean) ** 2).mean(axis=(0, 2), keepdims=True)
        return (y - mean) / jnp.sqrt(var + BN_EPS) * g[None, :, None] + be[None, :, None]

    lrelu = lambda y: jnp.maximum(y, LEAKY_SLOPE * y)
    out = lrelu(bn(conv(x, w1, b1), g1, be1))
    out = bn(conv(out, w2, b2), g2, be2)
    return lrelu(out + x)


# ---------------------------------- main ------------------------------------ #
if __name__ == "__main__":
    N, C, L, K = 2, 8, 16, 3   # inplanes == planes (downsample=None), stride=1

    key = jax.random.PRNGKey(0)
    keys = jax.random.split(key, 9)
    x = jax.random.normal(keys[0], (N, C, L), dtype=jnp.float32)

    params = (
        0.1 * jax.random.normal(keys[1], (C, C, K), jnp.float32),   # conv1.weight
        0.1 * jax.random.normal(keys[2], (C,), jnp.float32),        # conv1.bias
        1.0 + 0.1 * jax.random.normal(keys[3], (C,), jnp.float32),  # bn1.weight
        0.1 * jax.random.normal(keys[4], (C,), jnp.float32),        # bn1.bias
        0.1 * jax.random.normal(keys[5], (C, C, K), jnp.float32),   # conv2.weight
        0.1 * jax.random.normal(keys[6], (C,), jnp.float32),        # conv2.bias
        1.0 + 0.1 * jax.random.normal(keys[7], (C,), jnp.float32),  # bn2.weight
        0.1 * jax.random.normal(keys[8], (C,), jnp.float32),        # bn2.bias
    )

    # Exactness check: f32 MXU operands vs f32 reference (tight tolerance).
    out_f32 = jax.block_until_ready(basic_block(x, params, matmul_dtype=jnp.float32))
    ref_f32 = jax.block_until_ready(basic_block_ref(x, params, matmul_dtype=jnp.float32))
    assert out_f32.shape == (N, C, L) and out_f32.dtype == jnp.float32
    assert jnp.allclose(out_f32, ref_f32, rtol=1e-4, atol=1e-4), \
        f"f32 max err {jnp.abs(out_f32 - ref_f32).max()}"

    # Default fast path: bf16 MXU operands (f32 accumulation) vs a reference that
    # applies the same operand rounding.
    out_bf = jax.block_until_ready(basic_block(x, params))
    ref_bf = jax.block_until_ready(basic_block_ref(x, params, matmul_dtype=jnp.bfloat16))
    assert out_bf.shape == (N, C, L) and out_bf.dtype == jnp.float32
    assert jnp.allclose(out_bf, ref_bf, rtol=1e-2, atol=1e-2), \
        f"bf16 max err {jnp.abs(out_bf - ref_bf).max()}"

    print("KERNEL_OK")
</pallas_src>

<mosaic_0001>
module attributes {stable_mosaic.version = 11 : i64} {
  func.func @basic_block_kernel(%arg0: memref<2x16x128xf32, #tpu.memory_space<vmem>>, %arg1: memref<384x128xf32, #tpu.memory_space<vmem>>, %arg2: memref<1x1x128xf32, #tpu.memory_space<vmem>>, %arg3: memref<1x1x128xf32, #tpu.memory_space<vmem>>, %arg4: memref<384x128xf32, #tpu.memory_space<vmem>>, %arg5: memref<1x1x128xf32, #tpu.memory_space<vmem>>, %arg6: memref<1x1x128xf32, #tpu.memory_space<vmem>>, %arg7: memref<2x16x128xf32, #tpu.memory_space<vmem>>, %arg8: memref<2x32x128xf32, #tpu.memory_space<vmem>>) attributes {dimension_semantics = [], scalar_prefetch = 0 : i64, scratch_operands = 1 : i64, tpu.core_type = #tpu.core_type<tc>} {
    %cst = arith.constant 0.000000e+00 : f32
    %0 = vector.broadcast %cst : f32 to vector<2x8x128xf32>
    %c0 = arith.constant 0 : index
    %c0_0 = arith.constant 0 : index
    %c0_1 = arith.constant 0 : index
    %1 = vector.load %arg8[%c0, %c0_0, %c0_1] : memref<2x32x128xf32, #tpu.memory_space<vmem>>, vector<2x8x128xf32>
    tpu.vector_store %arg8[%c0, %c0_0, %c0_1], %0 {strides = array<i32>} : memref<2x32x128xf32, #tpu.memory_space<vmem>>, vector<2x8x128xf32>,
    %c0_2 = arith.constant 0 : index
    %c24 = arith.constant 24 : index
    %c0_3 = arith.constant 0 : index
    %2 = vector.load %arg8[%c0_2, %c24, %c0_3] : memref<2x32x128xf32, #tpu.memory_space<vmem>>, vector<2x8x128xf32>
    tpu.vector_store %arg8[%c0_2, %c24, %c0_3], %0 {strides = array<i32>} : memref<2x32x128xf32, #tpu.memory_space<vmem>>, vector<2x8x128xf32>,
    %c0_4 = arith.constant 0 : index
    %c0_5 = arith.constant 0 : index
    %c0_6 = arith.constant 0 : index
    %3 = vector.load %arg0[%c0_4, %c0_5, %c0_6] : memref<2x16x128xf32, #tpu.memory_space<vmem>>, vector<2x16x128xf32>
    %c0_7 = arith.constant 0 : index
    %c8 = arith.constant 8 : index
    %c0_8 = arith.constant 0 : index
    %4 = vector.load %arg8[%c0_7, %c8, %c0_8] : memref<2x32x128xf32, #tpu.memory_space<vmem>>, vector<2x16x128xf32>
    tpu.vector_store %arg8[%c0_7, %c8, %c0_8], %3 {strides = array<i32>} : memref<2x32x128xf32, #tpu.memory_space<vmem>>, vector<2x16x128xf32>,
    %c0_9 = arith.constant 0 : index
    %c0_10 = arith.constant 0 : index
    %c0_11 = arith.constant 0 : index
    %5 = vector.load %arg8[%c0_9, %c0_10, %c0_11] : memref<2x32x128xf32, #tpu.memory_space<vmem>>, vector<2x32x128xf32>
    %6 = vector.extract_strided_slice %5 {offsets = [0, 7, 0], sizes = [2, 16, 128], strides = [1, 1, 1]} : vector<2x32x128xf32> to vector<2x16x128xf32>
    %7 = vector.extract_strided_slice %5 {offsets = [0, 8, 0], sizes = [2, 16, 128], strides = [1, 1, 1]} : vector<2x32x128xf32> to vector<2x16x128xf32>
    %8 = vector.extract_strided_slice %5 {offsets = [0, 9, 0], sizes = [2, 16, 128], strides = [1, 1, 1]} : vector<2x32x128xf32> to vector<2x16x128xf32>
    %9 = tpu.concatenate %6, %7, %8 in 2 : vector<2x16x128xf32>, vector<2x16x128xf32>, vector<2x16x128xf32> -> vector<2x16x384xf32>
    %10 = vector.shape_cast %9 : vector<2x16x384xf32> to vector<32x384xf32>
    %c0_12 = arith.constant 0 : index
    %c0_13 = arith.constant 0 : index
    %11 = vector.load %arg1[%c0_12, %c0_13] : memref<384x128xf32, #tpu.memory_space<vmem>>, vector<384x128xf32>
    %cst_14 = arith.constant dense<0.000000e+00> : vector<32x128xf32>
    %12 = tpu.matmul %10, %11, %cst_14 {dimension_numbers = #tpu.dot_dimension_numbers<[1], [0], [0], [1], [0, 0, 1, 1], [], []>} : vector<32x384xf32>, vector<384x128xf32>, vector<32x128xf32> -> vector<32x128xf32>
    %13 = vector.shape_cast %12 : vector<32x128xf32> to vector<2x16x128xf32>
    %cst_15 = arith.constant dense<0.000000e+00> : vector<128xf32>
    %14 = vector.multi_reduction <add>, %13, %cst_15 [0, 1] : vector<2x16x128xf32> to vector<128xf32>
    %15 = vector.shape_cast %14 : vector<128xf32> to vector<1x1x128xf32>
    %cst_16 = arith.constant 3.200000e+01 : f32
    %16 = vector.broadcast %cst_16 : f32 to vector<1x1x128xf32>
    %17 = arith.divf %15, %16 : vector<1x1x128xf32>
    %18 = vector.broadcast %17 : vector<1x1x128xf32> to vector<2x16x128xf32>
    %19 = arith.subf %13, %18 : vector<2x16x128xf32>
    %20 = arith.mulf %19, %19 : vector<2x16x128xf32>
    %cst_17 = arith.constant dense<0.000000e+00> : vector<128xf32>
    %21 = vector.multi_reduction <add>, %20, %cst_17 [0, 1] : vector<2x16x128xf32> to vector<128xf32>
    %22 = vector.shape_cast %21 : vector<128xf32> to vector<1x1x128xf32>
    %cst_18 = arith.constant 3.200000e+01 : f32
    %23 = vector.broadcast %cst_18 : f32 to vector<1x1x128xf32>
    %24 = arith.divf %22, %23 : vector<1x1x128xf32>
    %c0_19 = arith.constant 0 : index
    %c0_20 = arith.constant 0 : index
    %c0_21 = arith.constant 0 : index
    %25 = vector.load %arg2[%c0_19, %c0_20, %c0_21] : memref<1x1x128xf32, #tpu.memory_space<vmem>>, vector<1x1x128xf32>
    %cst_22 = arith.constant 9.99999974E-6 : f32
    %26 = vector.broadcast %cst_22 : f32 to vector<1x1x128xf32>
    %27 = arith.addf %24, %26 : vector<1x1x128xf32>
    %28 = math.rsqrt %27 : vector<1x1x128xf32>
    %29 = arith.mulf %25, %28 : vector<1x1x128xf32>
    %c0_23 = arith.constant 0 : index
    %c0_24 = arith.constant 0 : index
    %c0_25 = arith.constant 0 : index
    %30 = vector.load %arg3[%c0_23, %c0_24, %c0_25] : memref<1x1x128xf32, #tpu.memory_space<vmem>>, vector<1x1x128xf32>
    %31 = arith.mulf %17, %29 : vector<1x1x128xf32>
    %32 = arith.subf %30, %31 : vector<1x1x128xf32>
    %33 = vector.broadcast %29 : vector<1x1x128xf32> to vector<2x16x128xf32>
    %34 = arith.mulf %13, %33 : vector<2x16x128xf32>
    %35 = vector.broadcast %32 : vector<1x1x128xf32> to vector<2x16x128xf32>
    %36 = arith.addf %34, %35 : vector<2x16x128xf32>
    %cst_26 = arith.constant 0.00999999977 : f32
    %37 = vector.broadcast %cst_26 : f32 to vector<2x16x128xf32>
    %38 = arith.mulf %37, %36 : vector<2x16x128xf32>
    %39 = arith.maximumf %36, %38 : vector<2x16x128xf32>
    %c0_27 = arith.constant 0 : index
    %c8_28 = arith.constant 8 : index
    %c0_29 = arith.constant 0 : index
    %40 = vector.load %arg8[%c0_27, %c8_28, %c0_29] : memref<2x32x128xf32, #tpu.memory_space<vmem>>, vector<2x16x128xf32>
    tpu.vector_store %arg8[%c0_27, %c8_28, %c0_29], %39 {strides = array<i32>} : memref<2x32x128xf32, #tpu.memory_space<vmem>>, vector<2x16x128xf32>,
    %c0_30 = arith.constant 0 : index
    %c0_31 = arith.constant 0 : index
    %c0_32 = arith.constant 0 : index
    %41 = vector.load %arg8[%c0_30, %c0_31, %c0_32] : memref<2x32x128xf32, #tpu.memory_space<vmem>>, vector<2x32x128xf32>
    %42 = vector.extract_strided_slice %41 {offsets = [0, 7, 0], sizes = [2, 16, 128], strides = [1, 1, 1]} : vector<2x32x128xf32> to vector<2x16x128xf32>
    %43 = vector.extract_strided_slice %41 {offsets = [0, 8, 0], sizes = [2, 16, 128], strides = [1, 1, 1]} : vector<2x32x128xf32> to vector<2x16x128xf32>
    %44 = vector.extract_strided_slice %41 {offsets = [0, 9, 0], sizes = [2, 16, 128], strides = [1, 1, 1]} : vector<2x32x128xf32> to vector<2x16x128xf32>
    %45 = tpu.concatenate %42, %43, %44 in 2 : vector<2x16x128xf32>, vector<2x16x128xf32>, vector<2x16x128xf32> -> vector<2x16x384xf32>
    %46 = vector.shape_cast %45 : vector<2x16x384xf32> to vector<32x384xf32>
    %c0_33 = arith.constant 0 : index
    %c0_34 = arith.constant 0 : index
    %47 = vector.load %arg4[%c0_33, %c0_34] : memref<384x128xf32, #tpu.memory_space<vmem>>, vector<384x128xf32>
    %cst_35 = arith.constant dense<0.000000e+00> : vector<32x128xf32>
    %48 = tpu.matmul %46, %47, %cst_35 {dimension_numbers = #tpu.dot_dimension_numbers<[1], [0], [0], [1], [0, 0, 1, 1], [], []>} : vector<32x384xf32>, vector<384x128xf32>, vector<32x128xf32> -> vector<32x128xf32>
    %49 = vector.shape_cast %48 : vector<32x128xf32> to vector<2x16x128xf32>
    %cst_36 = arith.constant dense<0.000000e+00> : vector<128xf32>
    %50 = vector.multi_reduction <add>, %49, %cst_36 [0, 1] : vector<2x16x128xf32> to vector<128xf32>
    %51 = vector.shape_cast %50 : vector<128xf32> to vector<1x1x128xf32>
    %cst_37 = arith.constant 3.200000e+01 : f32
    %52 = vector.broadcast %cst_37 : f32 to vector<1x1x128xf32>
    %53 = arith.divf %51, %52 : vector<1x1x128xf32>
    %54 = vector.broadcast %53 : vector<1x1x128xf32> to vector<2x16x128xf32>
    %55 = arith.subf %49, %54 : vector<2x16x128xf32>
    %56 = arith.mulf %55, %55 : vector<2x16x128xf32>
    %cst_38 = arith.constant dense<0.000000e+00> : vector<128xf32>
    %57 = vector.multi_reduction <add>, %56, %cst_38 [0, 1] : vector<2x16x128xf32> to vector<128xf32>
    %58 = vector.shape_cast %57 : vector<128xf32> to vector<1x1x128xf32>
    %cst_39 = arith.constant 3.200000e+01 : f32
    %59 = vector.broadcast %cst_39 : f32 to vector<1x1x128xf32>
    %60 = arith.divf %58, %59 : vector<1x1x128xf32>
    %c0_40 = arith.constant 0 : index
    %c0_41 = arith.constant 0 : index
    %c0_42 = arith.constant 0 : index
    %61 = vector.load %arg5[%c0_40, %c0_41, %c0_42] : memref<1x1x128xf32, #tpu.memory_space<vmem>>, vector<1x1x128xf32>
    %cst_43 = arith.constant 9.99999974E-6 : f32
    %62 = vector.broadcast %cst_43 : f32 to vector<1x1x128xf32>
    %63 = arith.addf %60, %62 : vector<1x1x128xf32>
    %64 = math.rsqrt %63 : vector<1x1x128xf32>
    %65 = arith.mulf %61, %64 : vector<1x1x128xf32>
    %c0_44 = arith.constant 0 : index
    %c0_45 = arith.constant 0 : index
    %c0_46 = arith.constant 0 : index
    %66 = vector.load %arg6[%c0_44, %c0_45, %c0_46] : memref<1x1x128xf32, #tpu.memory_space<vmem>>, vector<1x1x128xf32>
    %67 = arith.mulf %53, %65 : vector<1x1x128xf32>
    %68 = arith.subf %66, %67 : vector<1x1x128xf32>
    %69 = vector.broadcast %65 : vector<1x1x128xf32> to vector<2x16x128xf32>
    %70 = arith.mulf %49, %69 : vector<2x16x128xf32>
    %71 = vector.broadcast %68 : vector<1x1x128xf32> to vector<2x16x128xf32>
    %72 = arith.addf %70, %71 : vector<2x16x128xf32>
    %c0_47 = arith.constant 0 : index
    %c0_48 = arith.constant 0 : index
    %c0_49 = arith.constant 0 : index
    %73 = vector.load %arg0[%c0_47, %c0_48, %c0_49] : memref<2x16x128xf32, #tpu.memory_space<vmem>>, vector<2x16x128xf32>
    %74 = arith.addf %72, %73 : vector<2x16x128xf32>
    %cst_50 = arith.constant 0.00999999977 : f32
    %75 = vector.broadcast %cst_50 : f32 to vector<2x16x128xf32>
    %76 = arith.mulf %75, %74 : vector<2x16x128xf32>
    %77 = arith.maximumf %74, %76 : vector<2x16x128xf32>
    %c0_51 = arith.constant 0 : index
    %c0_52 = arith.constant 0 : index
    %c0_53 = arith.constant 0 : index
    %78 = vector.load %arg7[%c0_51, %c0_52, %c0_53] : memref<2x16x128xf32, #tpu.memory_space<vmem>>, vector<2x16x128xf32>
    tpu.vector_store %arg7[%c0_51, %c0_52, %c0_53], %77 {strides = array<i32>} : memref<2x16x128xf32, #tpu.memory_space<vmem>>, vector<2x16x128xf32>,
    return
  }
}

</mosaic_0001>

<llo_original>
// kernel: tpu_custom_call.1
$region0: #{tpu_custom_call.1}
  #allocation0 [shape = 'u32[]', space=smem, size = 0x4, offset = 0x4, fixed_abs, tag = 'smem constant byte address 0x4 - core index']
  #allocation1 [shape = 'u32[144,128]{1,0:T(1,128)}', space=vmem, size = 0x12000, scoped, tag = 'internal scratch']
  #allocation2 [shape = 'f32[2,32,128]{2,1,0:T(8,128)}', space=vmem, size = 0x8000, scoped, tag = 'scratch operand']
  %s0 = inlined_call_operand.hbm [shape: f32[2,16,128], index: 0, kind: input, shape index: {}]
  %s1 = inlined_call_operand.hbm [shape: f32[384,128], index: 1, kind: input, shape index: {}]
  %s2 = inlined_call_operand.vmem [shape: f32[1,1,128], index: 2, kind: input, shape index: {}]
  %s3 = inlined_call_operand.vmem [shape: f32[1,1,128], index: 3, kind: input, shape index: {}]
  %s4 = inlined_call_operand.hbm [shape: f32[384,128], index: 4, kind: input, shape index: {}]
  %s5 = inlined_call_operand.vmem [shape: f32[1,1,128], index: 5, kind: input, shape index: {}]
  %s6 = inlined_call_operand.vmem [shape: f32[1,1,128], index: 6, kind: input, shape index: {}]
  %s7 = inlined_call_operand.hbm [shape: f32[2,16,128], index: 7, kind: output, shape index: {}]
  %s8 = sld [smem:[#allocation0]]
  $region50: #{tpu_custom_call.1} parent=0
    _
  %s10 = ssub.s32 1, %s8
  %s11 = scalar_select 0, %s10, %s8
  $region1: #{tpu_custom_call.1} parent=0
    #allocation3 [shape = 'u8[16384]{0}', space=vmem, size = 0x4000, scoped, tag = 'input window, operand 0, single buffered']
    #allocation4 [shape = 's32[1]{0}', space=sflag, size = 0x4, scoped, tag = 'scoped memory for tpu_custom_call.1']
    #allocation5 [shape = 's32[1]{0}', space=sflag, size = 0x4, scoped, tag = 'scoped memory for tpu_custom_call.1']
    #allocation6 [shape = 'u8[196608]{0}', space=vmem, size = 0x30000, scoped, tag = 'input window, operand 1, single buffered']
    #allocation7 [shape = 's32[1]{0}', space=sflag, size = 0x4, scoped, tag = 'scoped memory for tpu_custom_call.1']
    #allocation8 [shape = 'u8[196608]{0}', space=vmem, size = 0x30000, scoped, tag = 'input window, operand 4, single buffered']
    #allocation9 [shape = 'u8[16384]{0}', space=vmem, size = 0x4000, scoped, tag = 'output window, operand 0, single buffered']
    %12 = vsyncpa [#allocation4], 0
    %13 = vsyncpa [#allocation7], 0
    %14 = vsyncpa [#allocation5], 0
    // Predicated region
    $region2: #{tpu_custom_call.1} parent=1 // pred_check
      _
    $region3: #{tpu_custom_call.1} parent=1 // pred_check_branch
      %16 = sbr.rel (0) target = $region5
    $region4: #{tpu_custom_call.1} parent=1 // pred_region
      %s18 = ssub.s32 512, 512
      %19 = vsyncadd [#allocation4], %s18
      %s20 = sshll.u32 [#allocation3], 4
      %s21 = int_to_ptr.vmem [resolvable:$true] %s20
      %26 = dma.hbm_to_vmem [thread:$0]  %s0, 512, %s21, [#allocation4], 128, 128, 8
    $region5: #{tpu_custom_call.1} parent=1 // pred_fallthru
      _
    // Predicated region
    $region6: #{tpu_custom_call.1} parent=1 // pred_check
      _
    $region7: #{tpu_custom_call.1} parent=1 // pred_check_branch
      %28 = sbr.rel (0) target = $region9
    $region8: #{tpu_custom_call.1} parent=1 // pred_region
      %s30 = ssub.s32 6144, 6144
      %31 = vsyncadd [#allocation7], %s30
      %s32 = sshll.u32 [#allocation6], 4
      %s33 = int_to_ptr.vmem [resolvable:$true] %s32
      %38 = dma.hbm_to_vmem [thread:$0]  %s1, 6144, %s33, [#allocation7], 128, 128, 8
    $region9: #{tpu_custom_call.1} parent=1 // pred_fallthru
      _
    // Predicated region
    $region10: #{tpu_custom_call.1} parent=1 // pred_check
      _
    $region11: #{tpu_custom_call.1} parent=1 // pred_check_branch
      %40 = sbr.rel (0) target = $region13
    $region12: #{tpu_custom_call.1} parent=1 // pred_region
      _
    $region13: #{tpu_custom_call.1} parent=1 // pred_fallthru
      _
    // Predicated region
    $region14: #{tpu_custom_call.1} parent=1 // pred_check
      _
    $region15: #{tpu_custom_call.1} parent=1 // pred_check_branch
      %42 = sbr.rel (0) target = $region17
    $region16: #{tpu_custom_call.1} parent=1 // pred_region
      _
    $region17: #{tpu_custom_call.1} parent=1 // pred_fallthru
      _
    // Predicated region
    $region18: #{tpu_custom_call.1} parent=1 // pred_check
      _
    $region19: #{tpu_custom_call.1} parent=1 // pred_check_branch
      %44 = sbr.rel (0) target = $region21
    $region20: #{tpu_custom_call.1} parent=1 // pred_region
      %s46 = ssub.s32 6144, 6144
      %47 = vsyncadd [#allocation7], %s46
      %s48 = sshll.u32 [#allocation8], 4
      %s49 = int_to_ptr.vmem [resolvable:$true] %s48
      %54 = dma.hbm_to_vmem [thread:$0]  %s4, 6144, %s49, [#allocation7], 128, 128, 8
    $region21: #{tpu_custom_call.1} parent=1 // pred_fallthru
      _
    // Predicated region
    $region22: #{tpu_custom_call.1} parent=1 // pred_check
      _
    $region23: #{tpu_custom_call.1} parent=1 // pred_check_branch
      %56 = sbr.rel (0) target = $region25
    $region24: #{tpu_custom_call.1} parent=1 // pred_region
      _
    $region25: #{tpu_custom_call.1} parent=1 // pred_fallthru
      _
    // Predicated region
    $region26: #{tpu_custom_call.1} parent=1 // pred_check
      _
    $region27: #{tpu_custom_call.1} parent=1 // pred_check_branch
      %58 = sbr.rel (0) target = $region29
    $region28: #{tpu_custom_call.1} parent=1 // pred_region
      _
    $region29: #{tpu_custom_call.1} parent=1 // pred_fallthru
      _
    // Predicated region
    $region30: #{tpu_custom_call.1} parent=1 // pred_check
      _
    $region31: #{tpu_custom_call.1} parent=1 // pred_check_branch
      %60 = sbr.rel (0) target = $region33
    $region32: #{tpu_custom_call.1} parent=1 // pred_region
      %61 = dma.done [#allocation4], 512
    $region33: #{tpu_custom_call.1} parent=1 // pred_fallthru
      _
    // Predicated region
    $region34: #{tpu_custom_call.1} parent=1 // pred_check
      _
    $region35: #{tpu_custom_call.1} parent=1 // pred_check_branch
      %63 = sbr.rel (0) target = $region37
    $region36: #{tpu_custom_call.1} parent=1 // pred_region
      %64 = dma.done [#allocation7], 6144
    $region37: #{tpu_custom_call.1} parent=1 // pred_fallthru
      _
    // Predicated region
    $region38: #{tpu_custom_call.1} parent=1 // pred_check
      _
    $region39: #{tpu_custom_call.1} parent=1 // pred_check_branch
      %66 = sbr.rel (0) target = $region41
    $region40: #{tpu_custom_call.1} parent=1 // pred_region
      %67 = dma.done [#allocation7], 6144
    $region41: #{tpu_custom_call.1} parent=1 // pred_fallthru
      _
    %68 = vst [vmem:[#allocation2] sm:$0xff] 0.0
    %69 = vst [vmem:[#allocation2 + $0x20] sm:$0xff] 0.0
    %70 = vst [vmem:[#allocation2 + $0x18] sm:$0xff] 0.0
    %71 = vst [vmem:[#allocation2 + $0x38] sm:$0xff] 0.0
    %v72 = vld [vmem:[#allocation3] sm:$0xff]
    %v73 = vld [vmem:[#allocation3 + $0x8] sm:$0xff]
    %v74 = vld [vmem:[#allocation3 + $0x10] sm:$0xff]
    %v75 = vld [vmem:[#allocation3 + $0x18] sm:$0xff]
    %76 = vst [vmem:[#allocation2 + $0x8] sm:$0xff] %v72
    %77 = vst [vmem:[#allocation2 + $0x10] sm:$0xff] %v73
    %78 = vst [vmem:[#allocation2 + $0x28] sm:$0xff] %v74
    %79 = vst [vmem:[#allocation2 + $0x30] sm:$0xff] %v75
    %v80 = vld [vmem:[#allocation2] sm:$0xff]
    %v81 = vld [vmem:[#allocation2 + $0x8] sm:$0xff]
    %v82 = vld [vmem:[#allocation2 + $0x10] sm:$0xff]
    %v83 = vld [vmem:[#allocation2 + $0x18] sm:$0xff]
    %v84 = vld [vmem:[#allocation2 + $0x20] sm:$0xff]
    %v85 = vld [vmem:[#allocation2 + $0x28] sm:$0xff]
    %v86 = vld [vmem:[#allocation2 + $0x30] sm:$0xff]
    %v87 = vld [vmem:[#allocation2 + $0x38] sm:$0xff]
    %vm92 = vcmask 1046528
    %v93 = vrot.slane %v81, 1
    %v94 = vrot.slane %v82, 1
    %v95 = vsel %vm92, %v93, %v94
    %v96 = vrot.slane %v85, 1
    %v97 = vrot.slane %v86, 1
    %v98 = vsel %vm92, %v96, %v97
    %vm101 = vcmask 1045504
    %v102 = vrot.slane %v81, 2
    %v103 = vrot.slane %v82, 2
    %v104 = vsel %vm101, %v102, %v103
    %v105 = vrot.slane %v83, 2
    %v106 = vsel %vm101, %v103, %v105
    %v107 = vrot.slane %v85, 2
    %v108 = vrot.slane %v86, 2
    %v109 = vsel %vm101, %v107, %v108
    %v110 = vrot.slane %v87, 2
    %v111 = vsel %vm101, %v108, %v110
    %vm114 = vcmask 1040384
    %v115 = vrot.slane %v80, 7
    %v116 = vrot.slane %v81, 7
    %v117 = vsel %vm114, %v115, %v116
    %v118 = vrot.slane %v93, 7
    %v119 = vrot.slane %v95, 7
    %v120 = vsel %vm114, %v118, %v119
    %v121 = vrot.slane %v102, 7
    %v122 = vrot.slane %v104, 7
    %v123 = vsel %vm114, %v121, %v122
    %v124 = vrot.slane %v82, 7
    %v125 = vsel %vm114, %v116, %v124
    %v126 = vrot.slane %v94, 7
    %v127 = vsel %vm114, %v119, %v126
    %v128 = vrot.slane %v106, 7
    %v129 = vsel %vm114, %v122, %v128
    %v130 = vrot.slane %v84, 7
    %v131 = vrot.slane %v85, 7
    %v132 = vsel %vm114, %v130, %v131
    %v133 = vrot.slane %v96, 7
    %v134 = vrot.slane %v98, 7
    %v135 = vsel %vm114, %v133, %v134
    %v136 = vrot.slane %v107, 7
    %v137 = vrot.slane %v109, 7
    %v138 = vsel %vm114, %v136, %v137
    %v139 = vrot.slane %v86, 7
    %v140 = vsel %vm114, %v131, %v139
    %v141 = vrot.slane %v97, 7
    %v142 = vsel %vm114, %v134, %v141
    %v143 = vrot.slane %v111, 7
    %v144 = vsel %vm114, %v137, %v143
    %v157 = vld [vmem:[#allocation6] sm:$0xff]
    %v158 = vld [vmem:[#allocation6 + $0x8] sm:$0xff]
    %v159 = vld [vmem:[#allocation6 + $0x10] sm:$0xff]
    %v160 = vld [vmem:[#allocation6 + $0x18] sm:$0xff]
    %v161 = vld [vmem:[#allocation6 + $0x20] sm:$0xff]
    %v162 = vld [vmem:[#allocation6 + $0x28] sm:$0xff]
    %v163 = vld [vmem:[#allocation6 + $0x30] sm:$0xff]
    %v164 = vld [vmem:[#allocation6 + $0x38] sm:$0xff]
    %v165 = vld [vmem:[#allocation6 + $0x40] sm:$0xff]
    %v166 = vld [vmem:[#allocation6 + $0x48] sm:$0xff]
    %v167 = vld [vmem:[#allocation6 + $0x50] sm:$0xff]
    %v168 = vld [vmem:[#allocation6 + $0x58] sm:$0xff]
    %v169 = vld [vmem:[#allocation6 + $0x60] sm:$0xff]
    %v170 = vld [vmem:[#allocation6 + $0x68] sm:$0xff]
    %v171 = vld [vmem:[#allocation6 + $0x70] sm:$0xff]
    %v172 = vld [vmem:[#allocation6 + $0x78] sm:$0xff]
    %v173 = vld [vmem:[#allocation6 + $0x80] sm:$0xff]
    %v174 = vld [vmem:[#allocation6 + $0x88] sm:$0xff]
    %v175 = vld [vmem:[#allocation6 + $0x90] sm:$0xff]
    %v176 = vld [vmem:[#allocation6 + $0x98] sm:$0xff]
    %v177 = vld [vmem:[#allocation6 + $0xa0] sm:$0xff]
    %v178 = vld [vmem:[#allocation6 + $0xa8] sm:$0xff]
    %v179 = vld [vmem:[#allocation6 + $0xb0] sm:$0xff]
    %v180 = vld [vmem:[#allocation6 + $0xb8] sm:$0xff]
    %v181 = vld [vmem:[#allocation6 + $0xc0] sm:$0xff]
    %v182 = vld [vmem:[#allocation6 + $0xc8] sm:$0xff]
    %v183 = vld [vmem:[#allocation6 + $0xd0] sm:$0xff]
    %v184 = vld [vmem:[#allocation6 + $0xd8] sm:$0xff]
    %v185 = vld [vmem:[#allocation6 + $0xe0] sm:$0xff]
    %v186 = vld [vmem:[#allocation6 + $0xe8] sm:$0xff]
    %v187 = vld [vmem:[#allocation6 + $0xf0] sm:$0xff]
    %v188 = vld [vmem:[#allocation6 + $0xf8] sm:$0xff]
    %v189 = vld [vmem:[#allocation6 + $0x100] sm:$0xff]
    %v190 = vld [vmem:[#allocation6 + $0x108] sm:$0xff]
    %v191 = vld [vmem:[#allocation6 + $0x110] sm:$0xff]
    %v192 = vld [vmem:[#allocation6 + $0x118] sm:$0xff]
    %v193 = vld [vmem:[#allocation6 + $0x120] sm:$0xff]
    %v194 = vld [vmem:[#allocation6 + $0x128] sm:$0xff]
    %v195 = vld [vmem:[#allocation6 + $0x130] sm:$0xff]
    %v196 = vld [vmem:[#allocation6 + $0x138] sm:$0xff]
    %v197 = vld [vmem:[#allocation6 + $0x140] sm:$0xff]
    %v198 = vld [vmem:[#allocation6 + $0x148] sm:$0xff]
    %v199 = vld [vmem:[#allocation6 + $0x150] sm:$0xff]
    %v200 = vld [vmem:[#allocation6 + $0x158] sm:$0xff]
    %v201 = vld [vmem:[#allocation6 + $0x160] sm:$0xff]
    %v202 = vld [vmem:[#allocation6 + $0x168] sm:$0xff]
    %v203 = vld [vmem:[#allocation6 + $0x170] sm:$0xff]
    %v204 = vld [vmem:[#allocation6 + $0x178] sm:$0xff]
    %205 = vmatprep.subr.mxu0 0.0
    %206 = vmatpush1.msra.mxu0 %v157
    %207 = vmatprep.subr.mxu0 0.0
    %208 = vmatpush1.msra.mxu0 %v158
    %209 = vmatprep.subr.mxu0 0.0
    %210 = vmatpush1.msra.mxu0 %v159
    %211 = vmatprep.subr.mxu0 0.0
    %212 = vmatpush1.msra.mxu0 %v160
    %213 = vmatprep.subr.mxu0 0.0
    %214 = vmatpush1.msra.mxu0 %v161
    %215 = vmatprep.subr.mxu0 0.0
    %216 = vmatpush1.msra.mxu0 %v162
    %217 = vmatprep.subr.mxu0 0.0
    %218 = vmatpush1.msra.mxu0 %v163
    %219 = vmatprep.subr.mxu0 0.0
    %220 = vmatpush1.msra.mxu0 %v164
    %221 = vmatprep.subr.mxu0 0.0
    %222 = vmatpush1.msra.mxu0 %v165
    %223 = vmatprep.subr.mxu0 0.0
    %224 = vmatpush1.msra.mxu0 %v166
    %225 = vmatprep.subr.mxu0 0.0
    %226 = vmatpush1.msra.mxu0 %v167
    %227 = vmatprep.subr.mxu0 0.0
    %228 = vmatpush1.msra.mxu0 %v168
    %229 = vmatprep.subr.mxu0 0.0
    %230 = vmatpush1.msra.mxu0 %v169
    %231 = vmatprep.subr.mxu0 0.0
    %232 = vmatpush1.msra.mxu0 %v170
    %233 = vmatprep.subr.mxu0 0.0
    %234 = vmatpush1.msra.mxu0 %v171
    %235 = vmatprep.subr.mxu0 0.0
    %236 = vmatpush1.msra.mxu0 %v172
    %237 = vmatprep.subr.mxu0 0.0
    %238 = vmatpush1.msra.mxu0 %v173
    %239 = vmatprep.subr.mxu0 0.0
    %240 = vmatpush1.msra.mxu0 %v174
    %241 = vmatprep.subr.mxu0 0.0
    %242 = vmatpush1.msra.mxu0 %v175
    %243 = vmatprep.subr.mxu0 0.0
    %244 = vmatpush1.msra.mxu0 %v176
    %245 = vmatprep.subr.mxu0 0.0
    %246 = vmatpush1.msra.mxu0 %v177
    %247 = vmatprep.subr.mxu0 0.0
    %248 = vmatpush1.msra.mxu0 %v178
    %249 = vmatprep.subr.mxu0 0.0
    %250 = vmatpush1.msra.mxu0 %v179
    %251 = vmatprep.subr.mxu0 0.0
    %252 = vmatpush1.msra.mxu0 %v180
    %253 = vmatprep.subr.mxu0 0.0
    %254 = vmatpush1.msra.mxu0 %v181
    %255 = vmatprep.subr.mxu0 0.0
    %256 = vmatpush1.msra.mxu0 %v182
    %257 = vmatprep.subr.mxu0 0.0
    %258 = vmatpush1.msra.mxu0 %v183
    %259 = vmatprep.subr.mxu0 0.0
    %260 = vmatpush1.msra.mxu0 %v184
    %261 = vmatprep.subr.mxu0 0.0
    %262 = vmatpush1.msra.mxu0 %v185
    %263 = vmatprep.subr.mxu0 0.0
    %264 = vmatpush1.msra.mxu0 %v186
    %265 = vmatprep.subr.mxu0 0.0
    %266 = vmatpush1.msra.mxu0 %v187
    %267 = vmatprep.subr.mxu0 0.0
    %268 = vmatpush1.msra.mxu0 %v188
    %269 = vmatprep.mubr.f32.mxu0 %v120
    %270 = vmatmul.mubr.f32.gmra.mrb[0].mxu0 %v117
    %v271 = vpop.f32.mrb[0].mxu0
    %v272 = vadd.f32 0.0, %v271
    %v273 = vpop.f32.mrb[0].mxu0
    %274 = vmatprep.mubr.f32.mxu0 %v127
    %275 = vmatmul.mubr.f32.gmra.mrb[0].mxu0 %v125
    %v276 = vpop.f32.mrb[0].mxu0
    %v277 = vadd.f32 0.0, %v276
    %v278 = vpop.f32.mrb[0].mxu0
    %279 = vmatprep.mubr.f32.mxu0 %v135
    %280 = vmatmul.mubr.f32.gmra.mrb[0].mxu0 %v132
    %v281 = vpop.f32.mrb[0].mxu0
    %v282 = vadd.f32 0.0, %v281
    %v283 = vpop.f32.mrb[0].mxu0
    %284 = vmatprep.mubr.f32.mxu0 %v142
    %285 = vmatmul.mubr.f32.gmra.mrb[0].mxu0 %v140
    %v286 = vpop.f32.mrb[0].mxu0
    %v287 = vadd.f32 0.0, %v286
    %v288 = vpop.f32.mrb[0].mxu0
    %289 = vdwg.mxu0
    %290 = vmatprep.subr.mxu0 0.0
    %291 = vmatpush1.msra.mxu0 %v189
    %292 = vmatprep.subr.mxu0 0.0
    %293 = vmatpush1.msra.mxu0 %v190
    %294 = vmatprep.subr.mxu0 0.0
    %295 = vmatpush1.msra.mxu0 %v191
    %296 = vmatprep.subr.mxu0 0.0
    %297 = vmatpush1.msra.mxu0 %v192
    %298 = vmatprep.subr.mxu0 0.0
    %299 = vmatpush1.msra.mxu0 %v193
    %300 = vmatprep.subr.mxu0 0.0
    %301 = vmatpush1.msra.mxu0 %v194
    %302 = vmatprep.subr.mxu0 0.0
    %303 = vmatpush1.msra.mxu0 %v195
    %304 = vmatprep.subr.mxu0 0.0
    %305 = vmatpush1.msra.mxu0 %v196
    %306 = vmatprep.subr.mxu0 0.0
    %307 = vmatpush1.msra.mxu0 %v197
    %308 = vmatprep.subr.mxu0 0.0
    %309 = vmatpush1.msra.mxu0 %v198
    %310 = vmatprep.subr.mxu0 0.0
    %311 = vmatpush1.msra.mxu0 %v199
    %312 = vmatprep.subr.mxu0 0.0
    %313 = vmatpush1.msra.mxu0 %v200
    %314 = vmatprep.subr.mxu0 0.0
    %315 = vmatpush1.msra.mxu0 %v201
    %316 = vmatprep.subr.mxu0 0.0
    %317 = vmatpush1.msra.mxu0 %v202
    %318 = vmatprep.subr.mxu0 0.0
    %319 = vmatpush1.msra.mxu0 %v203
    %320 = vmatprep.subr.mxu0 0.0
    %321 = vmatpush1.msra.mxu0 %v204
    %322 = vmatprep.subr.mxu0 0.0
    %323 = vmatpush1.msra.mxu0 0.0
    %324 = vmatprep.subr.mxu0 0.0
    %325 = vmatpush1.msra.mxu0 0.0
    %326 = vmatprep.subr.mxu0 0.0
    %327 = vmatpush1.msra.mxu0 0.0
    %328 = vmatprep.subr.mxu0 0.0
    %329 = vmatpush1.msra.mxu0 0.0
    %330 = vmatprep.subr.mxu0 0.0
    %331 = vmatpush1.msra.mxu0 0.0
    %332 = vmatprep.subr.mxu0 0.0
    %333 = vmatpush1.msra.mxu0 0.0
    %334 = vmatprep.subr.mxu0 0.0
    %335 = vmatpush1.msra.mxu0 0.0
    %336 = vmatprep.subr.mxu0 0.0
    %337 = vmatpush1.msra.mxu0 0.0
    %338 = vmatprep.subr.mxu0 0.0
    %339 = vmatpush1.msra.mxu0 0.0
    %340 = vmatprep.subr.mxu0 0.0
    %341 = vmatpush1.msra.mxu0 0.0
    %342 = vmatprep.subr.mxu0 0.0
    %343 = vmatpush1.msra.mxu0 0.0
    %344 = vmatprep.subr.mxu0 0.0
    %345 = vmatpush1.msra.mxu0 0.0
    %346 = vmatprep.subr.mxu0 0.0
    %347 = vmatpush1.msra.mxu0 0.0
    %348 = vmatprep.subr.mxu0 0.0
    %349 = vmatpush1.msra.mxu0 0.0
    %350 = vmatprep.subr.mxu0 0.0
    %351 = vmatpush1.msra.mxu0 0.0
    %352 = vmatprep.subr.mxu0 0.0
    %353 = vmatpush1.msra.mxu0 0.0
    %354 = vmatprep.mubr.f32.mxu0 0.0
    %355 = vmatmul.mubr.f32.gmra.mrb[0].mxu0 %v123
    %v356 = vpop.f32.mrb[0].mxu0
    %v357 = vadd.f32 %v272, %v356
    %v358 = vpop.f32.mrb[0].mxu0
    %359 = vmatprep.mubr.f32.mxu0 0.0
    %360 = vmatmul.mubr.f32.gmra.mrb[0].mxu0 %v129
    %v361 = vpop.f32.mrb[0].mxu0
    %v362 = vadd.f32 %v277, %v361
    %v363 = vpop.f32.mrb[0].mxu0
    %364 = vmatprep.mubr.f32.mxu0 0.0
    %365 = vmatmul.mubr.f32.gmra.mrb[0].mxu0 %v138
    %v366 = vpop.f32.mrb[0].mxu0
    %v367 = vadd.f32 %v282, %v366
    %v368 = vpop.f32.mrb[0].mxu0
    %369 = vmatprep.mubr.f32.mxu0 0.0
    %370 = vmatmul.mubr.f32.gmra.mrb[0].mxu0 %v144
    %v371 = vpop.f32.mrb[0].mxu0
    %v372 = vadd.f32 %v287, %v371
    %v373 = vpop.f32.mrb[0].mxu0
    %374 = vdwg.mxu0
    %v375 = vadd.f32 %v357, %v362
    %v376 = vadd.f32 %v375, %v367
    %v377 = vadd.f32 %v376, %v372
    %v378 = vrot.slane %v377, 4
    %v379 = vadd.f32 %v377, %v378
    %v380 = vrot.slane %v379, 2
    %v381 = vadd.f32 %v379, %v380
    %v382 = vrot.slane %v381, 1
    %v383 = vadd.f32 %v381, %v382
    %v384 = vrcp.pop 32.0
    %v385 = vmul.f32 %v383, %v384
    %v386 = vsub.f32 %v357, %v385
    %v387 = vsub.f32 %v362, %v385
    %v388 = vsub.f32 %v367, %v385
    %v389 = vsub.f32 %v372, %v385
    %v390 = vmul.f32 %v386, %v386
    %v391 = vmul.f32 %v387, %v387
    %v392 = vmul.f32 %v388, %v388
    %v393 = vmul.f32 %v389, %v389
    %v394 = vadd.f32 %v390, %v391
    %v395 = vadd.f32 %v394, %v392
    %v396 = vadd.f32 %v395, %v393
    %v397 = vrot.slane %v396, 4
    %v398 = vadd.f32 %v396, %v397
    %v399 = vrot.slane %v398, 2
    %v400 = vadd.f32 %v398, %v399
    %v401 = vrot.slane %v400, 1
    %v402 = vadd.f32 %v400, %v401
    %v403 = vmul.f32 %v402, %v384
    %v404 = vld [vmem:[%s2] sm:$0x1]
    %v405 = vadd.f32 %v403, 1e-05
    %v406 = vrsqrt.pop %v405
    %v407 = vmul.f32 %v404, %v406
    %v408 = vld [vmem:[%s3] sm:$0x1]
    %v409 = vmul.f32 %v385, %v407
    %v410 = vsub.f32 %v408, %v409
    %v412 = vlaneseq
    %v413 = vshrl.u32 %v412, 7
    %v414 = vsub.s32 0, %v413
    %v415 = vrot.slane %v407, %v414
    %v417 = vmul.f32 %v357, %v415
    %v418 = vmul.f32 %v362, %v415
    %v419 = vmul.f32 %v367, %v415
    %v420 = vmul.f32 %v372, %v415
    %v422 = vlaneseq
    %v423 = vshrl.u32 %v422, 7
    %v424 = vsub.s32 0, %v423
    %v425 = vrot.slane %v410, %v424
    %v427 = vadd.f32 %v417, %v425
    %v428 = vadd.f32 %v418, %v425
    %v429 = vadd.f32 %v419, %v425
    %v430 = vadd.f32 %v420, %v425
    %v431 = vmul.f32 %v427, 0.01
    %v432 = vmul.f32 %v428, 0.01
    %v433 = vmul.f32 %v429, 0.01
    %v434 = vmul.f32 %v430, 0.01
    %v435 = vmax.f32 %v427, %v431
    %v436 = vmax.f32 %v428, %v432
    %v437 = vmax.f32 %v429, %v433
    %v438 = vmax.f32 %v430, %v434
    %439 = vst [vmem:[#allocation2 + $0x8] sm:$0xff] %v435
    %440 = vst [vmem:[#allocation2 + $0x10] sm:$0xff] %v436
    %441 = vst [vmem:[#allocation2 + $0x28] sm:$0xff] %v437
    %442 = vst [vmem:[#allocation2 + $0x30] sm:$0xff] %v438
    %v443 = vld [vmem:[#allocation2] sm:$0xff]
    %v444 = vld [vmem:[#allocation2 + $0x8] sm:$0xff]
    %v445 = vld [vmem:[#allocation2 + $0x10] sm:$0xff]
    %v446 = vld [vmem:[#allocation2 + $0x18] sm:$0xff]
    %v447 = vld [vmem:[#allocation2 + $0x20] sm:$0xff]
    %v448 = vld [vmem:[#allocation2 + $0x28] sm:$0xff]
    %v449 = vld [vmem:[#allocation2 + $0x30] sm:$0xff]
    %v450 = vld [vmem:[#allocation2 + $0x38] sm:$0xff]
    %v455 = vrot.slane %v444, 1
    %v456 = vrot.slane %v445, 1
    %v457 = vsel %vm92, %v455, %v456
    %v458 = vrot.slane %v448, 1
    %v459 = vrot.slane %v449, 1
    %v460 = vsel %vm92, %v458, %v459
    %v463 = vrot.slane %v444, 2
    %v464 = vrot.slane %v445, 2
    %v465 = vsel %vm101, %v463, %v464
    %v466 = vrot.slane %v446, 2
    %v467 = vsel %vm101, %v464, %v466
    %v468 = vrot.slane %v448, 2
    %v469 = vrot.slane %v449, 2
    %v470 = vsel %vm101, %v468, %v469
    %v471 = vrot.slane %v450, 2
    %v472 = vsel %vm101, %v469, %v471
    %v475 = vrot.slane %v443, 7
    %v476 = vrot.slane %v444, 7
    %v477 = vsel %vm114, %v475, %v476
    %v478 = vrot.slane %v455, 7
    %v479 = vrot.slane %v457, 7
    %v480 = vsel %vm114, %v478, %v479
    %v481 = vrot.slane %v463, 7
    %v482 = vrot.slane %v465, 7
    %v483 = vsel %vm114, %v481, %v482
    %v484 = vrot.slane %v445, 7
    %v485 = vsel %vm114, %v476, %v484
    %v486 = vrot.slane %v456, 7
    %v487 = vsel %vm114, %v479, %v486
    %v488 = vrot.slane %v467, 7
    %v489 = vsel %vm114, %v482, %v488
    %v490 = vrot.slane %v447, 7
    %v491 = vrot.slane %v448, 7
    %v492 = vsel %vm114, %v490, %v491
    %v493 = vrot.slane %v458, 7
    %v494 = vrot.slane %v460, 7
    %v495 = vsel %vm114, %v493, %v494
    %v496 = vrot.slane %v468, 7
    %v497 = vrot.slane %v470, 7
    %v498 = vsel %vm114, %v496, %v497
    %v499 = vrot.slane %v449, 7
    %v500 = vsel %vm114, %v491, %v499
    %v501 = vrot.slane %v459, 7
    %v502 = vsel %vm114, %v494, %v501
    %v503 = vrot.slane %v472, 7
    %v504 = vsel %vm114, %v497, %v503
    %v517 = vld [vmem:[#allocation8] sm:$0xff]
    %v518 = vld [vmem:[#allocation8 + $0x8] sm:$0xff]
    %v519 = vld [vmem:[#allocation8 + $0x10] sm:$0xff]
    %v520 = vld [vmem:[#allocation8 + $0x18] sm:$0xff]
    %v521 = vld [vmem:[#allocation8 + $0x20] sm:$0xff]
    %v522 = vld [vmem:[#allocation8 + $0x28] sm:$0xff]
    %v523 = vld [vmem:[#allocation8 + $0x30] sm:$0xff]
    %v524 = vld [vmem:[#allocation8 + $0x38] sm:$0xff]
    %v525 = vld [vmem:[#allocation8 + $0x40] sm:$0xff]
    %v526 = vld [vmem:[#allocation8 + $0x48] sm:$0xff]
    %v527 = vld [vmem:[#allocation8 + $0x50] sm:$0xff]
    %v528 = vld [vmem:[#allocation8 + $0x58] sm:$0xff]
    %v529 = vld [vmem:[#allocation8 + $0x60] sm:$0xff]
    %v530 = vld [vmem:[#allocation8 + $0x68] sm:$0xff]
    %v531 = vld [vmem:[#allocation8 + $0x70] sm:$0xff]
    %v532 = vld [vmem:[#allocation8 + $0x78] sm:$0xff]
    %v533 = vld [vmem:[#allocation8 + $0x80] sm:$0xff]
    %v534 = vld [vmem:[#allocation8 + $0x88] sm:$0xff]
    %v535 = vld [vmem:[#allocation8 + $0x90] sm:$0xff]
    %v536 = vld [vmem:[#allocation8 + $0x98] sm:$0xff]
    %v537 = vld [vmem:[#allocation8 + $0xa0] sm:$0xff]
    %v538 = vld [vmem:[#allocation8 + $0xa8] sm:$0xff]
    %v539 = vld [vmem:[#allocation8 + $0xb0] sm:$0xff]
    %v540 = vld [vmem:[#allocation8 + $0xb8] sm:$0xff]
    %v541 = vld [vmem:[#allocation8 + $0xc0] sm:$0xff]
    %v542 = vld [vmem:[#allocation8 + $0xc8] sm:$0xff]
    %v543 = vld [vmem:[#allocation8 + $0xd0] sm:$0xff]
    %v544 = vld [vmem:[#allocation8 + $0xd8] sm:$0xff]
    %v545 = vld [vmem:[#allocation8 + $0xe0] sm:$0xff]
    %v546 = vld [vmem:[#allocation8 + $0xe8] sm:$0xff]
    %v547 = vld [vmem:[#allocation8 + $0xf0] sm:$0xff]
    %v548 = vld [vmem:[#allocation8 + $0xf8] sm:$0xff]
    %v549 = vld [vmem:[#allocation8 + $0x100] sm:$0xff]
    %v550 = vld [vmem:[#allocation8 + $0x108] sm:$0xff]
    %v551 = vld [vmem:[#allocation8 + $0x110] sm:$0xff]
    %v552 = vld [vmem:[#allocation8 + $0x118] sm:$0xff]
    %v553 = vld [vmem:[#allocation8 + $0x120] sm:$0xff]
    %v554 = vld [vmem:[#allocation8 + $0x128] sm:$0xff]
    %v555 = vld [vmem:[#allocation8 + $0x130] sm:$0xff]
    %v556 = vld [vmem:[#allocation8 + $0x138] sm:$0xff]
    %v557 = vld [vmem:[#allocation8 + $0x140] sm:$0xff]
    %v558 = vld [vmem:[#allocation8 + $0x148] sm:$0xff]
    %v559 = vld [vmem:[#allocation8 + $0x150] sm:$0xff]
    %v560 = vld [vmem:[#allocation8 + $0x158] sm:$0xff]
    %v561 = vld [vmem:[#allocation8 + $0x160] sm:$0xff]
    %v562 = vld [vmem:[#allocation8 + $0x168] sm:$0xff]
    %v563 = vld [vmem:[#allocation8 + $0x170] sm:$0xff]
    %v564 = vld [vmem:[#allocation8 + $0x178] sm:$0xff]
    %565 = vmatprep.subr.mxu0 0.0
    %566 = vmatpush1.msra.mxu0 %v517
    %567 = vmatprep.subr.mxu0 0.0
    %568 = vmatpush1.msra.mxu0 %v518
    %569 = vmatprep.subr.mxu0 0.0
    %570 = vmatpush1.msra.mxu0 %v519
    %571 = vmatprep.subr.mxu0 0.0
    %572 = vmatpush1.msra.mxu0 %v520
    %573 = vmatprep.subr.mxu0 0.0
    %574 = vmatpush1.msra.mxu0 %v521
    %575 = vmatprep.subr.mxu0 0.0
    %576 = vmatpush1.msra.mxu0 %v522
    %577 = vmatprep.subr.mxu0 0.0
    %578 = vmatpush1.msra.mxu0 %v523
    %579 = vmatprep.subr.mxu0 0.0
    %580 = vmatpush1.msra.mxu0 %v524
    %581 = vmatprep.subr.mxu0 0.0
    %582 = vmatpush1.msra.mxu0 %v525
    %583 = vmatprep.subr.mxu0 0.0
    %584 = vmatpush1.msra.mxu0 %v526
    %585 = vmatprep.subr.mxu0 0.0
    %586 = vmatpush1.msra.mxu0 %v527
    %587 = vmatprep.subr.mxu0 0.0
    %588 = vmatpush1.msra.mxu0 %v528
    %589 = vmatprep.subr.mxu0 0.0
    %590 = vmatpush1.msra.mxu0 %v529
    %591 = vmatprep.subr.mxu0 0.0
    %592 = vmatpush1.msra.mxu0 %v530
    %593 = vmatprep.subr.mxu0 0.0
    %594 = vmatpush1.msra.mxu0 %v531
    %595 = vmatprep.subr.mxu0 0.0
    %596 = vmatpush1.msra.mxu0 %v532
    %597 = vmatprep.subr.mxu0 0.0
    %598 = vmatpush1.msra.mxu0 %v533
    %599 = vmatprep.subr.mxu0 0.0
    %600 = vmatpush1.msra.mxu0 %v534
    %601 = vmatprep.subr.mxu0 0.0
    %602 = vmatpush1.msra.mxu0 %v535
    %603 = vmatprep.subr.mxu0 0.0
    %604 = vmatpush1.msra.mxu0 %v536
    %605 = vmatprep.subr.mxu0 0.0
    %606 = vmatpush1.msra.mxu0 %v537
    %607 = vmatprep.subr.mxu0 0.0
    %608 = vmatpush1.msra.mxu0 %v538
    %609 = vmatprep.subr.mxu0 0.0
    %610 = vmatpush1.msra.mxu0 %v539
    %611 = vmatprep.subr.mxu0 0.0
    %612 = vmatpush1.msra.mxu0 %v540
    %613 = vmatprep.subr.mxu0 0.0
    %614 = vmatpush1.msra.mxu0 %v541
    %615 = vmatprep.subr.mxu0 0.0
    %616 = vmatpush1.msra.mxu0 %v542
    %617 = vmatprep.subr.mxu0 0.0
    %618 = vmatpush1.msra.mxu0 %v543
    %619 = vmatprep.subr.mxu0 0.0
    %620 = vmatpush1.msra.mxu0 %v544
    %621 = vmatprep.subr.mxu0 0.0
    %622 = vmatpush1.msra.mxu0 %v545
    %623 = vmatprep.subr.mxu0 0.0
    %624 = vmatpush1.msra.mxu0 %v546
    %625 = vmatprep.subr.mxu0 0.0
    %626 = vmatpush1.msra.mxu0 %v547
    %627 = vmatprep.subr.mxu0 0.0
    %628 = vmatpush1.msra.mxu0 %v548
    %629 = vmatprep.mubr.f32.mxu0 %v480
    %630 = vmatmul.mubr.f32.gmra.mrb[0].mxu0 %v477
    %v631 = vpop.f32.mrb[0].mxu0
    %v632 = vadd.f32 0.0, %v631
    %v633 = vpop.f32.mrb[0].mxu0
    %634 = vmatprep.mubr.f32.mxu0 %v487
    %635 = vmatmul.mubr.f32.gmra.mrb[0].mxu0 %v485
    %v636 = vpop.f32.mrb[0].mxu0
    %v637 = vadd.f32 0.0, %v636
    %v638 = vpop.f32.mrb[0].mxu0
    %639 = vmatprep.mubr.f32.mxu0 %v495
    %640 = vmatmul.mubr.f32.gmra.mrb[0].mxu0 %v492
    %v641 = vpop.f32.mrb[0].mxu0
    %v642 = vadd.f32 0.0, %v641
    %v643 = vpop.f32.mrb[0].mxu0
    %644 = vmatprep.mubr.f32.mxu0 %v502
    %645 = vmatmul.mubr.f32.gmra.mrb[0].mxu0 %v500
    %v646 = vpop.f32.mrb[0].mxu0
    %v647 = vadd.f32 0.0, %v646
    %v648 = vpop.f32.mrb[0].mxu0
    %649 = vdwg.mxu0
    %650 = vmatprep.subr.mxu0 0.0
    %651 = vmatpush1.msra.mxu0 %v549
    %652 = vmatprep.subr.mxu0 0.0
    %653 = vmatpush1.msra.mxu0 %v550
    %654 = vmatprep.subr.mxu0 0.0
    %655 = vmatpush1.msra.mxu0 %v551
    %656 = vmatprep.subr.mxu0 0.0
    %657 = vmatpush1.msra.mxu0 %v552
    %658 = vmatprep.subr.mxu0 0.0
    %659 = vmatpush1.msra.mxu0 %v553
    %660 = vmatprep.subr.mxu0 0.0
    %661 = vmatpush1.msra.mxu0 %v554
    %662 = vmatprep.subr.mxu0 0.0
    %663 = vmatpush1.msra.mxu0 %v555
    %664 = vmatprep.subr.mxu0 0.0
    %665 = vmatpush1.msra.mxu0 %v556
    %666 = vmatprep.subr.mxu0 0.0
    %667 = vmatpush1.msra.mxu0 %v557
    %668 = vmatprep.subr.mxu0 0.0
    %669 = vmatpush1.msra.mxu0 %v558
    %670 = vmatprep.subr.mxu0 0.0
    %671 = vmatpush1.msra.mxu0 %v559
    %672 = vmatprep.subr.mxu0 0.0
    %673 = vmatpush1.msra.mxu0 %v560
    %674 = vmatprep.subr.mxu0 0.0
    %675 = vmatpush1.msra.mxu0 %v561
    %676 = vmatprep.subr.mxu0 0.0
    %677 = vmatpush1.msra.mxu0 %v562
    %678 = vmatprep.subr.mxu0 0.0
    %679 = vmatpush1.msra.mxu0 %v563
    %680 = vmatprep.subr.mxu0 0.0
    %681 = vmatpush1.msra.mxu0 %v564
    %682 = vmatprep.subr.mxu0 0.0
    %683 = vmatpush1.msra.mxu0 0.0
    %684 = vmatprep.subr.mxu0 0.0
    %685 = vmatpush1.msra.mxu0 0.0
    %686 = vmatprep.subr.mxu0 0.0
    %687 = vmatpush1.msra.mxu0 0.0
    %688 = vmatprep.subr.mxu0 0.0
    %689 = vmatpush1.msra.mxu0 0.0
    %690 = vmatprep.subr.mxu0 0.0
    %691 = vmatpush1.msra.mxu0 0.0
    %692 = vmatprep.subr.mxu0 0.0
    %693 = vmatpush1.msra.mxu0 0.0
    %694 = vmatprep.subr.mxu0 0.0
    %695 = vmatpush1.msra.mxu0 0.0
    %696 = vmatprep.subr.mxu0 0.0
    %697 = vmatpush1.msra.mxu0 0.0
    %698 = vmatprep.subr.mxu0 0.0
    %699 = vmatpush1.msra.mxu0 0.0
    %700 = vmatprep.subr.mxu0 0.0
    %701 = vmatpush1.msra.mxu0 0.0
    %702 = vmatprep.subr.mxu0 0.0
    %703 = vmatpush1.msra.mxu0 0.0
    %704 = vmatprep.subr.mxu0 0.0
    %705 = vmatpush1.msra.mxu0 0.0
    %706 = vmatprep.subr.mxu0 0.0
    %707 = vmatpush1.msra.mxu0 0.0
    %708 = vmatprep.subr.mxu0 0.0
    %709 = vmatpush1.msra.mxu0 0.0
    %710 = vmatprep.subr.mxu0 0.0
    %711 = vmatpush1.msra.mxu0 0.0
    %712 = vmatprep.subr.mxu0 0.0
    %713 = vmatpush1.msra.mxu0 0.0
    %714 = vmatprep.mubr.f32.mxu0 0.0
    %715 = vmatmul.mubr.f32.gmra.mrb[0].mxu0 %v483
    %v716 = vpop.f32.mrb[0].mxu0
    %v717 = vadd.f32 %v632, %v716
    %v718 = vpop.f32.mrb[0].mxu0
    %719 = vmatprep.mubr.f32.mxu0 0.0
    %720 = vmatmul.mubr.f32.gmra.mrb[0].mxu0 %v489
    %v721 = vpop.f32.mrb[0].mxu0
    %v722 = vadd.f32 %v637, %v721
    %v723 = vpop.f32.mrb[0].mxu0
    %724 = vmatprep.mubr.f32.mxu0 0.0
    %725 = vmatmul.mubr.f32.gmra.mrb[0].mxu0 %v498
    %v726 = vpop.f32.mrb[0].mxu0
    %v727 = vadd.f32 %v642, %v726
    %v728 = vpop.f32.mrb[0].mxu0
    %729 = vmatprep.mubr.f32.mxu0 0.0
    %730 = vmatmul.mubr.f32.gmra.mrb[0].mxu0 %v504
    %v731 = vpop.f32.mrb[0].mxu0
    %v732 = vadd.f32 %v647, %v731
    %v733 = vpop.f32.mrb[0].mxu0
    %734 = vdwg.mxu0
    %v735 = vadd.f32 %v717, %v722
    %v736 = vadd.f32 %v735, %v727
    %v737 = vadd.f32 %v736, %v732
    %v738 = vrot.slane %v737, 4
    %v739 = vadd.f32 %v737, %v738
    %v740 = vrot.slane %v739, 2
    %v741 = vadd.f32 %v739, %v740
    %v742 = vrot.slane %v741, 1
    %v743 = vadd.f32 %v741, %v742
    %v744 = vmul.f32 %v743, %v384
    %v745 = vsub.f32 %v717, %v744
    %v746 = vsub.f32 %v722, %v744
    %v747 = vsub.f32 %v727, %v744
    %v748 = vsub.f32 %v732, %v744
    %v749 = vmul.f32 %v745, %v745
    %v750 = vmul.f32 %v746, %v746
    %v751 = vmul.f32 %v747, %v747
    %v752 = vmul.f32 %v748, %v748
    %v753 = vadd.f32 %v749, %v750
    %v754 = vadd.f32 %v753, %v751
    %v755 = vadd.f32 %v754, %v752
    %v756 = vrot.slane %v755, 4
    %v757 = vadd.f32 %v755, %v756
    %v758 = vrot.slane %v757, 2
    %v759 = vadd.f32 %v757, %v758
    %v760 = vrot.slane %v759, 1
    %v761 = vadd.f32 %v759, %v760
    %v762 = vmul.f32 %v761, %v384
    %v763 = vld [vmem:[%s5] sm:$0x1]
    %v764 = vadd.f32 %v762, 1e-05
    %v765 = vrsqrt.pop %v764
    %v766 = vmul.f32 %v763, %v765
    %v767 = vld [vmem:[%s6] sm:$0x1]
    %v768 = vmul.f32 %v744, %v766
    %v769 = vsub.f32 %v767, %v768
    %v771 = vlaneseq
    %v772 = vshrl.u32 %v771, 7
    %v773 = vsub.s32 0, %v772
    %v774 = vrot.slane %v766, %v773
    %v776 = vmul.f32 %v717, %v774
    %v777 = vmul.f32 %v722, %v774
    %v778 = vmul.f32 %v727, %v774
    %v779 = vmul.f32 %v732, %v774
    %v781 = vlaneseq
    %v782 = vshrl.u32 %v781, 7
    %v783 = vsub.s32 0, %v782
    %v784 = vrot.slane %v769, %v783
    %v786 = vadd.f32 %v776, %v784
    %v787 = vadd.f32 %v777, %v784
    %v788 = vadd.f32 %v778, %v784
    %v789 = vadd.f32 %v779, %v784
    %v790 = vld [vmem:[#allocation3] sm:$0xff]
    %v791 = vld [vmem:[#allocation3 + $0x8] sm:$0xff]
    %v792 = vld [vmem:[#allocation3 + $0x10] sm:$0xff]
    %v793 = vld [vmem:[#allocation3 + $0x18] sm:$0xff]
    %v794 = vadd.f32 %v786, %v790
    %v795 = vadd.f32 %v787, %v791
    %v796 = vadd.f32 %v788, %v792
    %v797 = vadd.f32 %v789, %v793
    %v798 = vmul.f32 %v794, 0.01
    %v799 = vmul.f32 %v795, 0.01
    %v800 = vmul.f32 %v796, 0.01
    %v801 = vmul.f32 %v797, 0.01
    %v802 = vmax.f32 %v794, %v798
    %v803 = vmax.f32 %v795, %v799
    %v804 = vmax.f32 %v796, %v800
    %v805 = vmax.f32 %v797, %v801
    %806 = vst [vmem:[#allocation9] sm:$0xff] %v802
    %807 = vst [vmem:[#allocation9 + $0x8] sm:$0xff] %v803
    %808 = vst [vmem:[#allocation9 + $0x10] sm:$0xff] %v804
    %809 = vst [vmem:[#allocation9 + $0x18] sm:$0xff] %v805
    // Predicated region
    $region42: #{tpu_custom_call.1} parent=1 // pred_check
      _
    $region43: #{tpu_custom_call.1} parent=1 // pred_check_branch
      %811 = sbr.rel (0) target = $region45
    $region44: #{tpu_custom_call.1} parent=1 // pred_region
      %s813 = ssub.s32 512, 512
      %814 = vsyncadd [#allocation5], %s813
      %s815 = sshll.u32 [#allocation9], 4
      %s816 = int_to_ptr.vmem [resolvable:$true] %s815
      %821 = dma.vmem_to_hbm [thread:$0]  %s816, 512, %s7, [#allocation5], 128, 128, 8
    $region45: #{tpu_custom_call.1} parent=1 // pred_fallthru
      _
    // Predicated region
    $region46: #{tpu_custom_call.1} parent=1 // pred_check
      _
    $region47: #{tpu_custom_call.1} parent=1 // pred_check_branch
      %823 = sbr.rel (0) target = $region49
    $region48: #{tpu_custom_call.1} parent=1 // pred_region
      %824 = dma.done [#allocation5], 512
    $region49: #{tpu_custom_call.1} parent=1 // pred_fallthru
      _
    %825 = vsyncpa [#allocation4], 1
    %826 = vsyncpa [#allocation7], 1
    %827 = vsyncpa [#allocation5], 1

</llo_original>
